<compile_context>
chip_gen: v7x
topology: tpu7x:2x2x1
jax: 0.10.0
libtpu: 0.0.40
codegen_flags: <defaults>
</compile_context>

<pallas_src>
import jax
import jax.numpy as jnp
from jax.experimental import pallas as pl
from jax.experimental.pallas import tpu as pltpu


def mlp_logsoftmax_kernel(xT_ref, w1_ref, b1_ref, w2_ref, b2_ref, oT_ref):
    # xT_ref: (IN, TB) f32 VMEM block (batch on the 128-lane axis)
    # w1_ref: (IN*HID,) f32 SMEM, row-major from (IN, HID)
    # b1_ref: (HID,)    f32 SMEM
    # w2_ref: (HID*OUT,) f32 SMEM, row-major from (HID, OUT)
    # b2_ref: (OUT,)    f32 SMEM
    # oT_ref: (OUT, TB) f32 VMEM block
    in_f = xT_ref.shape[0]
    hid = b1_ref.shape[0]
    out_f = b2_ref.shape[0]

    xT = xT_ref[...]                                   # (IN, TB)

    # ---- Layer 1: h_j = tanh(b1[j] + sum_k W1[k, j] * x_k) ----------------
    # SMEM scalar weights broadcast against lane-dense (1, TB) batch rows:
    # pure VPU FMAs, tanh goes to the EUP slot.
    h_rows = []
    for j in range(hid):                               # static unroll (HID=3)
        acc = xT[0:1, :] * w1_ref[j] + b1_ref[j]
        for k in range(1, in_f):                       # static unroll (IN=2)
            acc = acc + xT[k:k + 1, :] * w1_ref[k * hid + j]
        h_rows.append(jnp.tanh(acc))

    # ---- Layer 2: y_j = b2[j] + sum_k W2[k, j] * h_k ----------------------
    y_rows = []
    for j in range(out_f):                             # static unroll (OUT=2)
        acc = h_rows[0] * w2_ref[j] + b2_ref[j]
        for k in range(1, hid):
            acc = acc + h_rows[k] * w2_ref[k * out_f + j]
        y_rows.append(acc)

    # ---- log_softmax over the class axis (now the sublane rows) -----------
    # Per-column, elementwise across OUT=2 rows: no XLU reductions needed.
    m = y_rows[0]
    for j in range(1, out_f):
        m = jnp.maximum(m, y_rows[j])
    z_rows = [y - m for y in y_rows]
    s = jnp.exp(z_rows[0])
    for j in range(1, out_f):
        s = s + jnp.exp(z_rows[j])
    lse = jnp.log(s)
    for j in range(out_f):
        oT_ref[j:j + 1, :] = z_rows[j] - lse


def _round_up(n, m):
    return ((n + m - 1) // m) * m


def _pick_batch_tile(B, block_b):
    # Lane-axis tile: multiple of 128, capped at block_b.
    tb = min(block_b, _round_up(max(B, 1), 128))
    # Keep >=2 grid steps when the batch spans more than one lane tile so
    # v7x megacore (dimension_semantics=("parallel",)) has work to shard.
    if B > 128 and pl.cdiv(B, tb) < 2:
        tb = max(128, _round_up(pl.cdiv(B, 2), 128))
    return tb


def net_forward(x, w1, b1, w2, b2, *, block_b=2048):
    B, in_f = x.shape
    hid = w1.shape[1]
    out_f = w2.shape[1]

    # Batch-on-lanes layout (cheap wrapper transpose: 8 B per batch row).
    xT = x.T                                           # (IN, B)

    tb = _pick_batch_tile(B, block_b)
    grid = (pl.cdiv(B, tb),)

    cost = pl.CostEstimate(
        flops=2 * B * (in_f * hid + hid * out_f),
        transcendentals=B * (hid + out_f + 1),         # tanh + exp + log
        bytes_accessed=4 * (B * in_f + B * out_f
                            + in_f * hid + hid + hid * out_f + out_f),
    )

    smem_spec = pl.BlockSpec(memory_space=pltpu.MemorySpace.SMEM)

    outT = pl.pallas_call(
        mlp_logsoftmax_kernel,
        out_shape=jax.ShapeDtypeStruct((out_f, B), jnp.float32),
        grid_spec=pltpu.PrefetchScalarGridSpec(
            num_scalar_prefetch=0,
            grid=grid,
            in_specs=[
                pl.BlockSpec((in_f, tb), lambda i: (0, i)),   # x^T: batch-tiled
                smem_spec,                                    # W1 flat (SMEM)
                smem_spec,                                    # b1 flat (SMEM)
                smem_spec,                                    # W2 flat (SMEM)
                smem_spec,                                    # b2 flat (SMEM)
            ],
            out_specs=pl.BlockSpec((out_f, tb), lambda i: (0, i)),
        ),
        compiler_params=pltpu.CompilerParams(
            dimension_semantics=("parallel",),    # megacore-shardable batch axis
        ),
        cost_estimate=cost,
    )(xT, w1.reshape(-1), b1.reshape(-1), w2.reshape(-1), b2.reshape(-1))

    return outT.T                                      # (B, OUT)


def reference_forward(x, w1, b1, w2, b2):
    h = jnp.tanh(x @ w1 + b1.reshape(-1))
    y = h @ w2 + b2.reshape(-1)
    return jax.nn.log_softmax(y, axis=-1)


if __name__ == "__main__":
    key = jax.random.PRNGKey(0)
    k_x, k_w1, k_b1, k_w2, k_b2 = jax.random.split(key, 5)

    IN, HID, OUT = 2, 3, 2

    # Deterministic synthetic parameters (not a checkpoint load).
    w1 = jax.random.normal(k_w1, (IN, HID), dtype=jnp.float32) * 0.5
    b1 = jax.random.normal(k_b1, (HID,), dtype=jnp.float32) * 0.1
    w2 = jax.random.normal(k_w2, (HID, OUT), dtype=jnp.float32) * 0.5
    b2 = jax.random.normal(k_b2, (OUT,), dtype=jnp.float32) * 0.1

    # Exercise: large tile + ragged last block (3000 -> 2x2048, last partial),
    # even multi-step grid (256 -> 2x128), ragged small grid (200 -> 2x128),
    # and a batch far below one lane tile (4 -> single masked block).
    for B in (3000, 256, 200, 4):
        x = jax.random.normal(jax.random.fold_in(k_x, B), (B, IN),
                              dtype=jnp.float32)
        out = jax.block_until_ready(net_forward(x, w1, b1, w2, b2))
        ref = reference_forward(x, w1, b1, w2, b2)
        assert out.shape == (B, OUT), (out.shape, B)
        assert jnp.allclose(out, ref, atol=1e-5, rtol=1e-5), f"mismatch at B={B}"

    print("KERNEL_OK")
</pallas_src>

<mosaic_0001>
module attributes {stable_mosaic.version = 11 : i64} {
  func.func @mlp_logsoftmax_kernel(%arg0: i32, %arg1: memref<2x2048xf32, #tpu.memory_space<vmem>>, %arg2: memref<6xf32, #tpu.memory_space<smem>>, %arg3: memref<3xf32, #tpu.memory_space<smem>>, %arg4: memref<6xf32, #tpu.memory_space<smem>>, %arg5: memref<2xf32, #tpu.memory_space<smem>>, %arg6: memref<2x2048xf32, #tpu.memory_space<vmem>>) attributes {dimension_semantics = [#tpu.dimension_semantics<parallel>], iteration_bounds = array<i64: 2>, scalar_prefetch = 0 : i64, scratch_operands = 0 : i64, tpu.core_type = #tpu.core_type<tc>, window_params = [{transform_indices = @transform_0, window_bounds = array<i64: 2, 2048>}, {transform_indices = @transform_1, window_bounds = array<i64: 6>}, {transform_indices = @transform_2, window_bounds = array<i64: 3>}, {transform_indices = @transform_3, window_bounds = array<i64: 6>}, {transform_indices = @transform_4, window_bounds = array<i64: 2>}, {transform_indices = @transform_5, window_bounds = array<i64: 2, 2048>}]} {
    %c0 = arith.constant 0 : index
    %c0_0 = arith.constant 0 : index
    %0 = vector.load %arg1[%c0, %c0_0] : memref<2x2048xf32, #tpu.memory_space<vmem>>, vector<2x2048xf32>
    %1 = vector.extract_strided_slice %0 {offsets = [0, 0], sizes = [1, 2048], strides = [1, 1]} : vector<2x2048xf32> to vector<1x2048xf32>
    %c0_1 = arith.constant 0 : index
    %2 = memref.load %arg2[%c0_1] : memref<6xf32, #tpu.memory_space<smem>>
    %3 = vector.broadcast %2 : f32 to vector<1x2048xf32>
    %4 = arith.mulf %1, %3 : vector<1x2048xf32>
    %c0_2 = arith.constant 0 : index
    %5 = memref.load %arg3[%c0_2] : memref<3xf32, #tpu.memory_space<smem>>
    %6 = vector.broadcast %5 : f32 to vector<1x2048xf32>
    %7 = arith.addf %4, %6 : vector<1x2048xf32>
    %8 = vector.extract_strided_slice %0 {offsets = [1, 0], sizes = [1, 2048], strides = [1, 1]} : vector<2x2048xf32> to vector<1x2048xf32>
    %c3 = arith.constant 3 : index
    %9 = memref.load %arg2[%c3] : memref<6xf32, #tpu.memory_space<smem>>
    %10 = vector.broadcast %9 : f32 to vector<1x2048xf32>
    %11 = arith.mulf %8, %10 : vector<1x2048xf32>
    %12 = arith.addf %7, %11 : vector<1x2048xf32>
    %13 = math.tanh %12 : vector<1x2048xf32>
    %14 = vector.extract_strided_slice %0 {offsets = [0, 0], sizes = [1, 2048], strides = [1, 1]} : vector<2x2048xf32> to vector<1x2048xf32>
    %c1 = arith.constant 1 : index
    %15 = memref.load %arg2[%c1] : memref<6xf32, #tpu.memory_space<smem>>
    %16 = vector.broadcast %15 : f32 to vector<1x2048xf32>
    %17 = arith.mulf %14, %16 : vector<1x2048xf32>
    %c1_3 = arith.constant 1 : index
    %18 = memref.load %arg3[%c1_3] : memref<3xf32, #tpu.memory_space<smem>>
    %19 = vector.broadcast %18 : f32 to vector<1x2048xf32>
    %20 = arith.addf %17, %19 : vector<1x2048xf32>
    %21 = vector.extract_strided_slice %0 {offsets = [1, 0], sizes = [1, 2048], strides = [1, 1]} : vector<2x2048xf32> to vector<1x2048xf32>
    %c4 = arith.constant 4 : index
    %22 = memref.load %arg2[%c4] : memref<6xf32, #tpu.memory_space<smem>>
    %23 = vector.broadcast %22 : f32 to vector<1x2048xf32>
    %24 = arith.mulf %21, %23 : vector<1x2048xf32>
    %25 = arith.addf %20, %24 : vector<1x2048xf32>
    %26 = math.tanh %25 : vector<1x2048xf32>
    %27 = vector.extract_strided_slice %0 {offsets = [0, 0], sizes = [1, 2048], strides = [1, 1]} : vector<2x2048xf32> to vector<1x2048xf32>
    %c2 = arith.constant 2 : index
    %28 = memref.load %arg2[%c2] : memref<6xf32, #tpu.memory_space<smem>>
    %29 = vector.broadcast %28 : f32 to vector<1x2048xf32>
    %30 = arith.mulf %27, %29 : vector<1x2048xf32>
    %c2_4 = arith.constant 2 : index
    %31 = memref.load %arg3[%c2_4] : memref<3xf32, #tpu.memory_space<smem>>
    %32 = vector.broadcast %31 : f32 to vector<1x2048xf32>
    %33 = arith.addf %30, %32 : vector<1x2048xf32>
    %34 = vector.extract_strided_slice %0 {offsets = [1, 0], sizes = [1, 2048], strides = [1, 1]} : vector<2x2048xf32> to vector<1x2048xf32>
    %c5 = arith.constant 5 : index
    %35 = memref.load %arg2[%c5] : memref<6xf32, #tpu.memory_space<smem>>
    %36 = vector.broadcast %35 : f32 to vector<1x2048xf32>
    %37 = arith.mulf %34, %36 : vector<1x2048xf32>
    %38 = arith.addf %33, %37 : vector<1x2048xf32>
    %39 = math.tanh %38 : vector<1x2048xf32>
    %c0_5 = arith.constant 0 : index
    %40 = memref.load %arg4[%c0_5] : memref<6xf32, #tpu.memory_space<smem>>
    %41 = vector.broadcast %40 : f32 to vector<1x2048xf32>
    %42 = arith.mulf %13, %41 : vector<1x2048xf32>
    %c0_6 = arith.constant 0 : index
    %43 = memref.load %arg5[%c0_6] : memref<2xf32, #tpu.memory_space<smem>>
    %44 = vector.broadcast %43 : f32 to vector<1x2048xf32>
    %45 = arith.addf %42, %44 : vector<1x2048xf32>
    %c2_7 = arith.constant 2 : index
    %46 = memref.load %arg4[%c2_7] : memref<6xf32, #tpu.memory_space<smem>>
    %47 = vector.broadcast %46 : f32 to vector<1x2048xf32>
    %48 = arith.mulf %26, %47 : vector<1x2048xf32>
    %49 = arith.addf %45, %48 : vector<1x2048xf32>
    %c4_8 = arith.constant 4 : index
    %50 = memref.load %arg4[%c4_8] : memref<6xf32, #tpu.memory_space<smem>>
    %51 = vector.broadcast %50 : f32 to vector<1x2048xf32>
    %52 = arith.mulf %39, %51 : vector<1x2048xf32>
    %53 = arith.addf %49, %52 : vector<1x2048xf32>
    %c1_9 = arith.constant 1 : index
    %54 = memref.load %arg4[%c1_9] : memref<6xf32, #tpu.memory_space<smem>>
    %55 = vector.broadcast %54 : f32 to vector<1x2048xf32>
    %56 = arith.mulf %13, %55 : vector<1x2048xf32>
    %c1_10 = arith.constant 1 : index
    %57 = memref.load %arg5[%c1_10] : memref<2xf32, #tpu.memory_space<smem>>
    %58 = vector.broadcast %57 : f32 to vector<1x2048xf32>
    %59 = arith.addf %56, %58 : vector<1x2048xf32>
    %c3_11 = arith.constant 3 : index
    %60 = memref.load %arg4[%c3_11] : memref<6xf32, #tpu.memory_space<smem>>
    %61 = vector.broadcast %60 : f32 to vector<1x2048xf32>
    %62 = arith.mulf %26, %61 : vector<1x2048xf32>
    %63 = arith.addf %59, %62 : vector<1x2048xf32>
    %c5_12 = arith.constant 5 : index
    %64 = memref.load %arg4[%c5_12] : memref<6xf32, #tpu.memory_space<smem>>
    %65 = vector.broadcast %64 : f32 to vector<1x2048xf32>
    %66 = arith.mulf %39, %65 : vector<1x2048xf32>
    %67 = arith.addf %63, %66 : vector<1x2048xf32>
    %68 = arith.maximumf %53, %67 : vector<1x2048xf32>
    %69 = arith.subf %53, %68 : vector<1x2048xf32>
    %70 = arith.subf %67, %68 : vector<1x2048xf32>
    %71 = math.exp %69 : vector<1x2048xf32>
    %72 = math.exp %70 : vector<1x2048xf32>
    %73 = arith.addf %71, %72 : vector<1x2048xf32>
    %74 = math.log %73 : vector<1x2048xf32>
    %75 = arith.subf %69, %74 : vector<1x2048xf32>
    %c0_13 = arith.constant 0 : index
    %c0_14 = arith.constant 0 : index
    %76 = vector.load %arg6[%c0_13, %c0_14] : memref<2x2048xf32, #tpu.memory_space<vmem>>, vector<1x2048xf32>
    tpu.vector_store %arg6[%c0_13, %c0_14], %75 {strides = array<i32>} : memref<2x2048xf32, #tpu.memory_space<vmem>>, vector<1x2048xf32>,
    %77 = arith.subf %70, %74 : vector<1x2048xf32>
    %c1_15 = arith.constant 1 : index
    %c0_16 = arith.constant 0 : index
    %78 = vector.load %arg6[%c1_15, %c0_16] : memref<2x2048xf32, #tpu.memory_space<vmem>>, vector<1x2048xf32>
    tpu.vector_store %arg6[%c1_15, %c0_16], %77 {strides = array<i32>} : memref<2x2048xf32, #tpu.memory_space<vmem>>, vector<1x2048xf32>,
    return
  }
  func.func @transform_0(%arg0: i32) -> (i32, i32) {
    %c0_i32 = arith.constant 0 : i32
    %c0_i32_0 = arith.constant 0 : i32
    return %c0_i32, %arg0 : i32, i32
  }
  func.func @transform_1(%arg0: i32) -> i32 {
    %c0_i32 = arith.constant 0 : i32
    %c0_i32_0 = arith.constant 0 : i32
    return %c0_i32 : i32
  }
  func.func @transform_2(%arg0: i32) -> i32 {
    %c0_i32 = arith.constant 0 : i32
    %c0_i32_0 = arith.constant 0 : i32
    return %c0_i32 : i32
  }
  func.func @transform_3(%arg0: i32) -> i32 {
    %c0_i32 = arith.constant 0 : i32
    %c0_i32_0 = arith.constant 0 : i32
    return %c0_i32 : i32
  }
  func.func @transform_4(%arg0: i32) -> i32 {
    %c0_i32 = arith.constant 0 : i32
    %c0_i32_0 = arith.constant 0 : i32
    return %c0_i32 : i32
  }
  func.func @transform_5(%arg0: i32) -> (i32, i32) {
    %c0_i32 = arith.constant 0 : i32
    %c0_i32_0 = arith.constant 0 : i32
    return %c0_i32, %arg0 : i32, i32
  }
}

</mosaic_0001>

<llo_original>
// kernel: tpu_custom_call.1
$region0: #{tpu_custom_call.1}
  #allocation0 [shape = 'u32[]', space=smem, size = 0x4, offset = 0x4, fixed_abs, tag = 'smem constant byte address 0x4 - core index']
  #allocation1 [shape = 'u32[144,128]{1,0:T(1,128)}', space=vmem, size = 0x12000, scoped, tag = 'internal scratch']
  %s0 = inlined_call_operand.hbm [shape: f32[2,3000], index: 0, kind: input, shape index: {}]
  %s1 = inlined_call_operand.vmem [shape: f32[6], index: 1, kind: input, shape index: {}]
  %s2 = inlined_call_operand.vmem [shape: f32[3], index: 2, kind: input, shape index: {}]
  %s3 = inlined_call_operand.vmem [shape: f32[6], index: 3, kind: input, shape index: {}]
  %s4 = inlined_call_operand.vmem [shape: f32[2], index: 4, kind: input, shape index: {}]
  %s5 = inlined_call_operand.hbm [shape: f32[2,3000], index: 5, kind: output, shape index: {}]
  %s6 = sld [smem:[#allocation0]]
  $region73: #{tpu_custom_call.1} parent=0
    _
  %s8 = ssub.s32 1, %s6
  %s9 = scalar_select 0, %s8, %s6
  $region1: #{tpu_custom_call.1} parent=0
    #allocation2 [shape = 'u8[32768]{0}', space=vmem, size = 0x8000, scoped, tag = 'input window, operand 0']
    #allocation3 [shape = 's32[2]{0}', space=sflag, size = 0x8, scoped, tag = 'scoped memory for tpu_custom_call.1']
    #allocation4 [shape = 's32[2]{0}', space=sflag, size = 0x8, scoped, tag = 'scoped memory for tpu_custom_call.1']
    #allocation5 [shape = 's32[2]{0}', space=sflag, size = 0x8, scoped, tag = 'scoped memory for tpu_custom_call.1']
    #allocation6 [shape = 'u8[512]{0}', space=smem, size = 0x200, scoped, tag = 'input window, operand 1, single buffered']
    #allocation7 [shape = 'u8[512]{0}', space=smem, size = 0x200, scoped, tag = 'input window, operand 2, single buffered']
    #allocation8 [shape = 's32[1]{0}', space=sflag, size = 0x4, scoped, tag = 'scoped memory for tpu_custom_call.1']
    #allocation9 [shape = 'u8[512]{0}', space=smem, size = 0x200, scoped, tag = 'input window, operand 3, single buffered']
    #allocation10 [shape = 'u8[512]{0}', space=smem, size = 0x200, scoped, tag = 'input window, operand 4, single buffered']
    #allocation11 [shape = 's32[1]{0}', space=sflag, size = 0x4, scoped, tag = 'scoped memory for tpu_custom_call.1']
    #allocation12 [shape = 'u8[32768]{0}', space=vmem, size = 0x8000, scoped, tag = 'output window, operand 0']
    %10 = vsyncpa [#allocation3], 0
    %s11 = scalar_lea.sflag [#allocation3], 1
    %12 = vsyncpa %s11, 0
    %13 = vsyncpa [#allocation5], 0
    %14 = vsyncpa [#allocation8], 0
    %15 = vsyncpa [#allocation11], 0
    %16 = vsyncpa [#allocation4], 0
    %s17 = scalar_lea.sflag [#allocation4], 1
    %18 = vsyncpa %s17, 0
    loop: start=0, step=1, limit=4
    $region2: #{tpu_custom_call.1} parent=1 // loop_pre_header
      _
    $region3: #{tpu_custom_call.1} parent=1 // loop_header
      %s20 = sphi 0, %s24
      %p21 = scmp.ge.s32.totalorder %s20, 4
      %s30 = sphi 0, %s32
      %s33 = sphi 0, %s30
      %s34 = sphi 0, %s33
      %s50 = sphi 0, %s34
      %s54 = sphi 0, %s54
      %s56 = sphi 0, %s54
      %s57 = sphi 0, %s56
      %s71 = sphi 0, %s57
      %s75 = sphi 0, %s75
      %s77 = sphi 0, %s75
      %s78 = sphi 0, %s77
      %s92 = sphi 0, %s78
      %s96 = sphi 0, %s96
      %s98 = sphi 0, %s96
      %s99 = sphi 0, %s98
      %s113 = sphi 0, %s99
      %s117 = sphi 0, %s117
      %s119 = sphi 0, %s117
      %s120 = sphi 0, %s119
      %s134 = sphi 0, %s120
      %s140 = sphi 0, %s142
      %s143 = sphi 0, %s140
      %s144 = sphi 0, %s143
      %s160 = sphi 0, %s144
    $region4: #{tpu_custom_call.1} parent=1 // loop_header_branch
      %23 = sbr.rel (%p21) target = $region8
    $region5: #{tpu_custom_call.1} parent=1 // loop_body
      %s25 = ssub.s32 %s20, 1
      %s26 = ssub.s32 %s20, 2
      %s27 = sadd.s32 %s20, 1
      %s28 = ssub.s32 %s20, %s27
      %p29 = scmp.eq.s32.totalorder %s28, 0
      %s31 = sadd.s32 %s30, 1
      %s32 = scalar_select %p29, %s30, %s31
      %p35 = pneg %p29
      %p36 = scmp.eq.s32.totalorder %s20, 1
      %p37 = por %p35, %p36
      %p38 = scmp.ne.s32.totalorder %s30, %s33
      %p39 = scmp.eq.s32.totalorder %s20, 0
      %p40 = por %p38, %p39
      %p41 = scmp.ne.s32.totalorder %s30, %s33
      %p42 = scmp.eq.s32.totalorder %s25, 1
      %p43 = por %p41, %p42
      %p44 = scmp.ne.s32.totalorder %s33, %s34
      %p45 = scmp.eq.s32.totalorder %s25, 0
      %p46 = por %p44, %p45
      %p47 = scmp.ne.s32.totalorder %s33, %s34
      %p48 = scmp.eq.s32.totalorder %s26, 1
      %p49 = por %p47, %p48
      %p51 = scmp.ne.s32.totalorder %s34, %s50
      %p52 = scmp.eq.s32.totalorder %s26, 0
      %p53 = por %p51, %p52
      %s55 = sadd.s32 %s54, 1
      %p58 = scmp.eq.s32.totalorder %s20, 1
      %p59 = scmp.ne.s32.totalorder %s54, %s56
      %p60 = scmp.eq.s32.totalorder %s20, 0
      %p61 = por %p59, %p60
      %p62 = scmp.ne.s32.totalorder %s54, %s56
      %p63 = scmp.eq.s32.totalorder %s25, 1
      %p64 = por %p62, %p63
      %p65 = scmp.ne.s32.totalorder %s56, %s57
      %p66 = scmp.eq.s32.totalorder %s25, 0
      %p67 = por %p65, %p66
      %p68 = scmp.ne.s32.totalorder %s56, %s57
      %p69 = scmp.eq.s32.totalorder %s26, 1
      %p70 = por %p68, %p69
      %p72 = scmp.ne.s32.totalorder %s57, %s71
      %p73 = scmp.eq.s32.totalorder %s26, 0
      %p74 = por %p72, %p73
      %s76 = sadd.s32 %s75, 1
      %p79 = scmp.eq.s32.totalorder %s20, 1
      %p80 = scmp.ne.s32.totalorder %s75, %s77
      %p81 = scmp.eq.s32.totalorder %s20, 0
      %p82 = por %p80, %p81
      %p83 = scmp.ne.s32.totalorder %s75, %s77
      %p84 = scmp.eq.s32.totalorder %s25, 1
      %p85 = por %p83, %p84
      %p86 = scmp.ne.s32.totalorder %s77, %s78
      %p87 = scmp.eq.s32.totalorder %s25, 0
      %p88 = por %p86, %p87
      %p89 = scmp.ne.s32.totalorder %s77, %s78
      %p90 = scmp.eq.s32.totalorder %s26, 1
      %p91 = por %p89, %p90
      %p93 = scmp.ne.s32.totalorder %s78, %s92
      %p94 = scmp.eq.s32.totalorder %s26, 0
      %p95 = por %p93, %p94
      %s97 = sadd.s32 %s96, 1
      %p100 = scmp.eq.s32.totalorder %s20, 1
      %p101 = scmp.ne.s32.totalorder %s96, %s98
      %p102 = scmp.eq.s32.totalorder %s20, 0
      %p103 = por %p101, %p102
      %p104 = scmp.ne.s32.totalorder %s96, %s98
      %p105 = scmp.eq.s32.totalorder %s25, 1
      %p106 = por %p104, %p105
      %p107 = scmp.ne.s32.totalorder %s98, %s99
      %p108 = scmp.eq.s32.totalorder %s25, 0
      %p109 = por %p107, %p108
      %p110 = scmp.ne.s32.totalorder %s98, %s99
      %p111 = scmp.eq.s32.totalorder %s26, 1
      %p112 = por %p110, %p111
      %p114 = scmp.ne.s32.totalorder %s99, %s113
      %p115 = scmp.eq.s32.totalorder %s26, 0
      %p116 = por %p114, %p115
      %s118 = sadd.s32 %s117, 1
      %p121 = scmp.eq.s32.totalorder %s20, 1
      %p122 = scmp.ne.s32.totalorder %s117, %s119
      %p123 = scmp.eq.s32.totalorder %s20, 0
      %p124 = por %p122, %p123
      %p125 = scmp.ne.s32.totalorder %s117, %s119
      %p126 = scmp.eq.s32.totalorder %s25, 1
      %p127 = por %p125, %p126
      %p128 = scmp.ne.s32.totalorder %s119, %s120
      %p129 = scmp.eq.s32.totalorder %s25, 0
      %p130 = por %p128, %p129
      %p131 = scmp.ne.s32.totalorder %s119, %s120
      %p132 = scmp.eq.s32.totalorder %s26, 1
      %p133 = por %p131, %p132
      %p135 = scmp.ne.s32.totalorder %s120, %s134
      %p136 = scmp.eq.s32.totalorder %s26, 0
      %p137 = por %p135, %p136
      %s138 = ssub.s32 %s20, %s27
      %p139 = scmp.eq.s32.totalorder %s138, 0
      %s141 = sadd.s32 %s140, 1
      %s142 = scalar_select %p139, %s140, %s141
      %p145 = pneg %p139
      %p146 = scmp.eq.s32.totalorder %s20, 1
      %p147 = por %p145, %p146
      %p148 = scmp.ne.s32.totalorder %s140, %s143
      %p149 = scmp.eq.s32.totalorder %s20, 0
      %p150 = por %p148, %p149
      %p151 = scmp.ne.s32.totalorder %s140, %s143
      %p152 = scmp.eq.s32.totalorder %s25, 1
      %p153 = por %p151, %p152
      %p154 = scmp.ne.s32.totalorder %s143, %s144
      %p155 = scmp.eq.s32.totalorder %s25, 0
      %p156 = por %p154, %p155
      %p157 = scmp.ne.s32.totalorder %s143, %s144
      %p158 = scmp.eq.s32.totalorder %s26, 1
      %p159 = por %p157, %p158
      %p161 = scmp.ne.s32.totalorder %s144, %s160
      %p162 = scmp.eq.s32.totalorder %s26, 0
      %p163 = por %p161, %p162
      %p164 = scmp.le.s32.totalorder 1, %s20
      %p165 = scmp.lt.s32.totalorder %s20, 3
      %p166 = pnand %p164, %p165
      %p167 = pneg %p166
      // Predicated region
      $region9: #{tpu_custom_call.1} parent=5 // pred_check
        _
      $region10: #{tpu_custom_call.1} parent=5 // pred_check_branch
        %169 = sbr.rel (%p166) target = $region12
      $region11: #{tpu_custom_call.1} parent=5 // pred_region
        %s170 = ssub.s32 %s20, 1
        // Predicated region
        $region13: #{tpu_custom_call.1} parent=11 // pred_check
          %p171 = pneg %p67
        $region14: #{tpu_custom_call.1} parent=11 // pred_check_branch
          %173 = sbr.rel (%p171) target = $region16
        $region15: #{tpu_custom_call.1} parent=11 // pred_region
          %s175 = ssub.s32 16, 16
          %176 = vsyncadd [#allocation5], %s175
          %s178 = sshll.u32 %s1, 4
          %s179 = int_to_ptr.vmem [resolvable:$true] %s178
          %181 = dma.vmem_to_smem %s179, 16, [#allocation6], [#allocation5]
        $region16: #{tpu_custom_call.1} parent=11 // pred_fallthru
          _
        // Predicated region
        $region17: #{tpu_custom_call.1} parent=11 // pred_check
          %p182 = pneg %p88
        $region18: #{tpu_custom_call.1} parent=11 // pred_check_branch
          %184 = sbr.rel (%p182) target = $region20
        $region19: #{tpu_custom_call.1} parent=11 // pred_region
          %s186 = ssub.s32 16, 16
          %187 = vsyncadd [#allocation8], %s186
          %s189 = sshll.u32 %s2, 4
          %s190 = int_to_ptr.vmem [resolvable:$true] %s189
          %192 = dma.vmem_to_smem %s190, 16, [#allocation7], [#allocation8]
        $region20: #{tpu_custom_call.1} parent=11 // pred_fallthru
          _
        // Predicated region
        $region21: #{tpu_custom_call.1} parent=11 // pred_check
          %p193 = pneg %p109
        $region22: #{tpu_custom_call.1} parent=11 // pred_check_branch
          %195 = sbr.rel (%p193) target = $region24
        $region23: #{tpu_custom_call.1} parent=11 // pred_region
          %s197 = ssub.s32 16, 16
          %198 = vsyncadd [#allocation8], %s197
          %s200 = sshll.u32 %s3, 4
          %s201 = int_to_ptr.vmem [resolvable:$true] %s200
          %203 = dma.vmem_to_smem %s201, 16, [#allocation9], [#allocation8]
        $region24: #{tpu_custom_call.1} parent=11 // pred_fallthru
          _
        // Predicated region
        $region25: #{tpu_custom_call.1} parent=11 // pred_check
          %p204 = pneg %p130
        $region26: #{tpu_custom_call.1} parent=11 // pred_check_branch
          %206 = sbr.rel (%p204) target = $region28
        $region27: #{tpu_custom_call.1} parent=11 // pred_region
          %s208 = ssub.s32 16, 16
          %209 = vsyncadd [#allocation11], %s208
          %s211 = sshll.u32 %s4, 4
          %s212 = int_to_ptr.vmem [resolvable:$true] %s211
          %214 = dma.vmem_to_smem %s212, 16, [#allocation10], [#allocation11]
        $region28: #{tpu_custom_call.1} parent=11 // pred_fallthru
          _
      $region12: #{tpu_custom_call.1} parent=5 // pred_fallthru
        _
      %p215 = scmp.lt.s32.totalorder %s20, 2
      // Predicated region
      $region29: #{tpu_custom_call.1} parent=5 // pred_check
        %p216 = pneg %p215
      $region30: #{tpu_custom_call.1} parent=5 // pred_check_branch
        %218 = sbr.rel (%p216) target = $region32
      $region31: #{tpu_custom_call.1} parent=5 // pred_region
        // Predicated region
        $region33: #{tpu_custom_call.1} parent=31 // pred_check
          %p219 = pneg %p40
        $region34: #{tpu_custom_call.1} parent=31 // pred_check_branch
          %221 = sbr.rel (%p219) target = $region36
        $region35: #{tpu_custom_call.1} parent=31 // pred_region
          %s222 = sand.u32 %s30, 1
          %s223 = scalar_lea.sflag [#allocation3], %s222
          %s224 = sand.u32 %s30, 1
          %s225 = smul.addr %s224, 32
          %s226 = scalar_lea.vmem [#allocation2], %s225
          %s227 = smul.u32 16, %s20
          %s228 = ssub.s32 24, %s227
          %p229 = scmp.lt.s32.totalorder %s228, 16
          %s230 = scalar_select %p229, %s228, 16
          %s231 = smul.u32 32, %s230
          %s233 = ssub.s32 512, %s231
          %234 = vsyncadd %s223, %s233
          %p235 = scmp.ne.s32.totalorder 0, %s231
          %s236 = smul.addr %s227, 32
          %s237 = scalar_lea.hbm %s0, %s236
          %s238 = smul.u32 %s230, 2
          %s239 = sshll.u32 %s238, 4
          %s240 = sshll.u32 %s226, 4
          %s241 = int_to_ptr.vmem [resolvable:$true] %s240
          %243 = dma.hbm_to_vmem [thread:$0]  (%p235), %s237, %s239, %s241, %s223
        $region36: #{tpu_custom_call.1} parent=31 // pred_fallthru
          _
      $region32: #{tpu_custom_call.1} parent=5 // pred_fallthru
        _
      %p244 = scmp.le.s32.totalorder 1, %s20
      %p245 = scmp.lt.s32.totalorder %s20, 3
      %p246 = pnand %p244, %p245
      %p247 = pneg %p246
      // Predicated region
      $region37: #{tpu_custom_call.1} parent=5 // pred_check
        _
      $region38: #{tpu_custom_call.1} parent=5 // pred_check_branch
        %249 = sbr.rel (%p246) target = $region40
      $region39: #{tpu_custom_call.1} parent=5 // pred_region
        %s250 = ssub.s32 %s20, 1
        %s251 = sand.u32 %s33, 1
        %s252 = scalar_lea.sflag [#allocation3], %s251
        %s253 = sand.u32 %s33, 1
        %s254 = smul.addr %s253, 32
        %s255 = scalar_lea.vmem [#allocation2], %s254
        // Predicated region
        $region41: #{tpu_custom_call.1} parent=39 // pred_check
          %p256 = pneg %p46
        $region42: #{tpu_custom_call.1} parent=39 // pred_check_branch
          %258 = sbr.rel (%p256) target = $region44
        $region43: #{tpu_custom_call.1} parent=39 // pred_region
          %259 = dma.done %s252, 512
        $region44: #{tpu_custom_call.1} parent=39 // pred_fallthru
          _
        // Predicated region
        $region45: #{tpu_custom_call.1} parent=39 // pred_check
          %p260 = pneg %p67
        $region46: #{tpu_custom_call.1} parent=39 // pred_check_branch
          %262 = sbr.rel (%p260) target = $region48
        $region47: #{tpu_custom_call.1} parent=39 // pred_region
          %263 = dma.done [#allocation5], 16
        $region48: #{tpu_custom_call.1} parent=39 // pred_fallthru
          _
        // Predicated region
        $region49: #{tpu_custom_call.1} parent=39 // pred_check
          %p264 = pneg %p88
        $region50: #{tpu_custom_call.1} parent=39 // pred_check_branch
          %266 = sbr.rel (%p264) target = $region52
        $region51: #{tpu_custom_call.1} parent=39 // pred_region
          %267 = dma.done [#allocation8], 16
        $region52: #{tpu_custom_call.1} parent=39 // pred_fallthru
          _
        // Predicated region
        $region53: #{tpu_custom_call.1} parent=39 // pred_check
          %p268 = pneg %p109
        $region54: #{tpu_custom_call.1} parent=39 // pred_check_branch
          %270 = sbr.rel (%p268) target = $region56
        $region55: #{tpu_custom_call.1} parent=39 // pred_region
          %271 = dma.done [#allocation8], 16
        $region56: #{tpu_custom_call.1} parent=39 // pred_fallthru
          _
        // Predicated region
        $region57: #{tpu_custom_call.1} parent=39 // pred_check
          %p272 = pneg %p130
        $region58: #{tpu_custom_call.1} parent=39 // pred_check_branch
          %274 = sbr.rel (%p272) target = $region60
        $region59: #{tpu_custom_call.1} parent=39 // pred_region
          %275 = dma.done [#allocation11], 16
        $region60: #{tpu_custom_call.1} parent=39 // pred_fallthru
          _
        %276 = sfence
        %s277 = sand.u32 %s33, 1
        %s278 = scalar_lea.sflag [#allocation3], %s277
        %s279 = sand.u32 %s33, 1
        %s280 = smul.addr %s279, 32
        %s281 = scalar_lea.vmem [#allocation2], %s280
        %p282 = pneg %p46
        %p283 = pneg %p43
        %p284 = pneg %p67
        %p285 = pneg %p64
        %p286 = pneg %p88
        %p287 = pneg %p85
        %p288 = pneg %p109
        %p289 = pneg %p106
        %p290 = pneg %p130
        %p291 = pneg %p127
        %p292 = pneg %p156
        %p293 = pneg %p153
        %s294 = sand.u32 %s143, 1
        %s295 = scalar_lea.sflag [#allocation4], %s294
        %s296 = sand.u32 %s143, 1
        %s297 = smul.addr %s296, 32
        %s298 = scalar_lea.vmem [#allocation12], %s297
        %s299 = smul.u32 16, %s25
        %s300 = ssub.s32 24, %s299
        %p301 = scmp.lt.s32.totalorder %s300, 16
        %s302 = scalar_select %p301, %s300, 16
        %s303 = smul.u32 32, %s302
        %s304 = smul.u32 16, %s25
        %s305 = ssub.s32 24, %s304
        %p306 = scmp.lt.s32.totalorder %s305, 16
        %s307 = scalar_select %p306, %s305, 16
        %s308 = smul.u32 32, %s307
        %v309 = vld [vmem:[%s255] sm:$0xff]
        %v310 = vld [vmem:[%s255 + $0x8] sm:$0xff]
        %v311 = vld [vmem:[%s255 + $0x10] sm:$0xff]
        %v312 = vld [vmem:[%s255 + $0x18] sm:$0xff]
        %s313 = sld [smem:[#allocation6]]
        %v314 = vstv %s313
        %v315 = vmul.f32 %v309, %v314
        %v316 = vmul.f32 %v310, %v314
        %v317 = vmul.f32 %v311, %v314
        %v318 = vmul.f32 %v312, %v314
        %s319 = sld [smem:[#allocation7]]
        %v320 = vstv %s319
        %v321 = vadd.f32 %v315, %v320
        %v322 = vadd.f32 %v316, %v320
        %v323 = vadd.f32 %v317, %v320
        %v324 = vadd.f32 %v318, %v320
        %s325 = sld [smem:[#allocation6 + $0x3]]
        %v326 = vstv %s325
        %v327 = vmul.f32 %v309, %v326
        %v328 = vmul.f32 %v310, %v326
        %v329 = vmul.f32 %v311, %v326
        %v330 = vmul.f32 %v312, %v326
        %v335 = vrot.slane %v327, 7
        %v336 = vrot.slane %v335, 2
        %v337 = vrot.slane %v328, 7
        %v338 = vrot.slane %v337, 2
        %v339 = vrot.slane %v329, 7
        %v340 = vrot.slane %v339, 2
        %v341 = vrot.slane %v330, 7
        %v342 = vrot.slane %v341, 2
        %v347 = vadd.f32 %v321, %v336
        %v348 = vadd.f32 %v322, %v338
        %v349 = vadd.f32 %v323, %v340
        %v350 = vadd.f32 %v324, %v342
        %v351 = vtanh.pop %v347
        %v352 = vtanh.pop %v348
        %v353 = vtanh.pop %v349
        %v354 = vtanh.pop %v350
        %s355 = sld [smem:[#allocation6 + $0x1]]
        %v356 = vstv %s355
        %v357 = vmul.f32 %v309, %v356
        %v358 = vmul.f32 %v310, %v356
        %v359 = vmul.f32 %v311, %v356
        %v360 = vmul.f32 %v312, %v356
        %s361 = sld [smem:[#allocation7 + $0x1]]
        %v362 = vstv %s361
        %v363 = vadd.f32 %v357, %v362
        %v364 = vadd.f32 %v358, %v362
        %v365 = vadd.f32 %v359, %v362
        %v366 = vadd.f32 %v360, %v362
        %s367 = sld [smem:[#allocation6 + $0x4]]
        %v368 = vstv %s367
        %v369 = vmul.f32 %v309, %v368
        %v370 = vmul.f32 %v310, %v368
        %v371 = vmul.f32 %v311, %v368
        %v372 = vmul.f32 %v312, %v368
        %v377 = vrot.slane %v369, 7
        %v378 = vrot.slane %v377, 2
        %v379 = vrot.slane %v370, 7
        %v380 = vrot.slane %v379, 2
        %v381 = vrot.slane %v371, 7
        %v382 = vrot.slane %v381, 2
        %v383 = vrot.slane %v372, 7
        %v384 = vrot.slane %v383, 2
        %v389 = vadd.f32 %v363, %v378
        %v390 = vadd.f32 %v364, %v380
        %v391 = vadd.f32 %v365, %v382
        %v392 = vadd.f32 %v366, %v384
        %v393 = vtanh.pop %v389
        %v394 = vtanh.pop %v390
        %v395 = vtanh.pop %v391
        %v396 = vtanh.pop %v392
        %s397 = sld [smem:[#allocation6 + $0x2]]
        %v398 = vstv %s397
        %v399 = vmul.f32 %v309, %v398
        %v400 = vmul.f32 %v310, %v398
        %v401 = vmul.f32 %v311, %v398
        %v402 = vmul.f32 %v312, %v398
        %s403 = sld [smem:[#allocation7 + $0x2]]
        %v404 = vstv %s403
        %v405 = vadd.f32 %v399, %v404
        %v406 = vadd.f32 %v400, %v404
        %v407 = vadd.f32 %v401, %v404
        %v408 = vadd.f32 %v402, %v404
        %s409 = sld [smem:[#allocation6 + $0x5]]
        %v410 = vstv %s409
        %v411 = vmul.f32 %v309, %v410
        %v412 = vmul.f32 %v310, %v410
        %v413 = vmul.f32 %v311, %v410
        %v414 = vmul.f32 %v312, %v410
        %v419 = vrot.slane %v411, 7
        %v420 = vrot.slane %v419, 2
        %v421 = vrot.slane %v412, 7
        %v422 = vrot.slane %v421, 2
        %v423 = vrot.slane %v413, 7
        %v424 = vrot.slane %v423, 2
        %v425 = vrot.slane %v414, 7
        %v426 = vrot.slane %v425, 2
        %v431 = vadd.f32 %v405, %v420
        %v432 = vadd.f32 %v406, %v422
        %v433 = vadd.f32 %v407, %v424
        %v434 = vadd.f32 %v408, %v426
        %v435 = vtanh.pop %v431
        %v436 = vtanh.pop %v432
        %v437 = vtanh.pop %v433
        %v438 = vtanh.pop %v434
        %s439 = sld [smem:[#allocation9]]
        %v440 = vstv %s439
        %v441 = vmul.f32 %v351, %v440
        %v442 = vmul.f32 %v352, %v440
        %v443 = vmul.f32 %v353, %v440
        %v444 = vmul.f32 %v354, %v440
        %s445 = sld [smem:[#allocation10]]
        %v446 = vstv %s445
        %v447 = vadd.f32 %v441, %v446
        %v448 = vadd.f32 %v442, %v446
        %v449 = vadd.f32 %v443, %v446
        %v450 = vadd.f32 %v444, %v446
        %s451 = sld [smem:[#allocation9 + $0x2]]
        %v452 = vstv %s451
        %v453 = vmul.f32 %v393, %v452
        %v454 = vmul.f32 %v394, %v452
        %v455 = vmul.f32 %v395, %v452
        %v456 = vmul.f32 %v396, %v452
        %v457 = vadd.f32 %v447, %v453
        %v458 = vadd.f32 %v448, %v454
        %v459 = vadd.f32 %v449, %v455
        %v460 = vadd.f32 %v450, %v456
        %s461 = sld [smem:[#allocation9 + $0x4]]
        %v462 = vstv %s461
        %v463 = vmul.f32 %v435, %v462
        %v464 = vmul.f32 %v436, %v462
        %v465 = vmul.f32 %v437, %v462
        %v466 = vmul.f32 %v438, %v462
        %v467 = vadd.f32 %v457, %v463
        %v468 = vadd.f32 %v458, %v464
        %v469 = vadd.f32 %v459, %v465
        %v470 = vadd.f32 %v460, %v466
        %s471 = sld [smem:[#allocation9 + $0x1]]
        %v472 = vstv %s471
        %v473 = vmul.f32 %v351, %v472
        %v474 = vmul.f32 %v352, %v472
        %v475 = vmul.f32 %v353, %v472
        %v476 = vmul.f32 %v354, %v472
        %s477 = sld [smem:[#allocation10 + $0x1]]
        %v478 = vstv %s477
        %v479 = vadd.f32 %v473, %v478
        %v480 = vadd.f32 %v474, %v478
        %v481 = vadd.f32 %v475, %v478
        %v482 = vadd.f32 %v476, %v478
        %s483 = sld [smem:[#allocation9 + $0x3]]
        %v484 = vstv %s483
        %v485 = vmul.f32 %v393, %v484
        %v486 = vmul.f32 %v394, %v484
        %v487 = vmul.f32 %v395, %v484
        %v488 = vmul.f32 %v396, %v484
        %v489 = vadd.f32 %v479, %v485
        %v490 = vadd.f32 %v480, %v486
        %v491 = vadd.f32 %v481, %v487
        %v492 = vadd.f32 %v482, %v488
        %s493 = sld [smem:[#allocation9 + $0x5]]
        %v494 = vstv %s493
        %v495 = vmul.f32 %v435, %v494
        %v496 = vmul.f32 %v436, %v494
        %v497 = vmul.f32 %v437, %v494
        %v498 = vmul.f32 %v438, %v494
        %v499 = vadd.f32 %v489, %v495
        %v500 = vadd.f32 %v490, %v496
        %v501 = vadd.f32 %v491, %v497
        %v502 = vadd.f32 %v492, %v498
        %v503 = vmax.f32 %v467, %v499
        %v504 = vmax.f32 %v468, %v500
        %v505 = vmax.f32 %v469, %v501
        %v506 = vmax.f32 %v470, %v502
        %v507 = vsub.f32 %v467, %v503
        %v508 = vsub.f32 %v468, %v504
        %v509 = vsub.f32 %v469, %v505
        %v510 = vsub.f32 %v470, %v506
        %v511 = vsub.f32 %v499, %v503
        %v512 = vsub.f32 %v500, %v504
        %v513 = vsub.f32 %v501, %v505
        %v514 = vsub.f32 %v502, %v506
        %v515 = vmul.f32 %v507, 1.442695
        %v516 = vpow.pop %v515
        %v517 = vmul.f32 %v508, 1.442695
        %v518 = vpow.pop %v517
        %v519 = vmul.f32 %v509, 1.442695
        %v520 = vpow.pop %v519
        %v521 = vmul.f32 %v510, 1.442695
        %v522 = vpow.pop %v521
        %v523 = vmul.f32 %v511, 1.442695
        %v524 = vpow.pop %v523
        %v525 = vmul.f32 %v512, 1.442695
        %v526 = vpow.pop %v525
        %v527 = vmul.f32 %v513, 1.442695
        %v528 = vpow.pop %v527
        %v529 = vmul.f32 %v514, 1.442695
        %v530 = vpow.pop %v529
        %v531 = vadd.f32 %v516, %v524
        %v532 = vadd.f32 %v518, %v526
        %v533 = vadd.f32 %v520, %v528
        %v534 = vadd.f32 %v522, %v530
        %v535 = vlog2.pop %v531
        %v536 = vmul.f32 %v535, 0.6931472
        %v537 = vlog2.pop %v532
        %v538 = vmul.f32 %v537, 0.6931472
        %v539 = vlog2.pop %v533
        %v540 = vmul.f32 %v539, 0.6931472
        %v541 = vlog2.pop %v534
        %v542 = vmul.f32 %v541, 0.6931472
        %v543 = vsub.f32 %v507, %v536
        %v544 = vsub.f32 %v508, %v538
        %v545 = vsub.f32 %v509, %v540
        %v546 = vsub.f32 %v510, %v542
        %v552 = vunpack.c.l.s4 1966171168
        %v553 = vunpack.c.0.s8 %v552
        %v554 = vlaneseq
        %v555 = vshrl.u32 %v554, 7
        %v556 = vsub.s32 %v553, %v555
        %v557 = vrot.slane %v543, %v556
        %v559 = vunpack.c.l.s4 1966171168
        %v560 = vunpack.c.0.s8 %v559
        %v561 = vlaneseq
        %v562 = vshrl.u32 %v561, 7
        %v563 = vsub.s32 %v560, %v562
        %v564 = vrot.slane %v544, %v563
        %v565 = vcombine.low %v557, %v564
        %v567 = vunpack.c.l.s4 1966171168
        %v568 = vunpack.c.0.s8 %v567
        %v569 = vlaneseq
        %v570 = vshrl.u32 %v569, 7
        %v571 = vsub.s32 %v568, %v570
        %v572 = vrot.slane %v545, %v571
        %v574 = vunpack.c.l.s4 1966171168
        %v575 = vunpack.c.0.s8 %v574
        %v576 = vlaneseq
        %v577 = vshrl.u32 %v576, 7
        %v578 = vsub.s32 %v575, %v577
        %v579 = vrot.slane %v546, %v578
        %v580 = vcombine.low %v572, %v579
        %583 = vst [vmem:[%s298] ss:$2 sm:$0xff] %v565
        %s584 = scalar_lea.vmem %s298, 16 [#allocation12]
        %585 = vst [vmem:[%s584] ss:$2 sm:$0xff] %v580
        %v586 = vsub.f32 %v511, %v536
        %v587 = vsub.f32 %v512, %v538
        %v588 = vsub.f32 %v513, %v540
        %v589 = vsub.f32 %v514, %v542
        %v595 = vunpack.c.l.s4 1966171168
        %v596 = vunpack.c.0.s8 %v595
        %v597 = vlaneseq
        %v598 = vshrl.u32 %v597, 7
        %v599 = vsub.s32 %v596, %v598
        %v600 = vrot.slane %v586, %v599
        %v602 = vunpack.c.l.s4 1966171168
        %v603 = vunpack.c.0.s8 %v602
        %v604 = vlaneseq
        %v605 = vshrl.u32 %v604, 7
        %v606 = vsub.s32 %v603, %v605
        %v607 = vrot.slane %v587, %v606
        %v608 = vcombine.low %v600, %v607
        %v610 = vunpack.c.l.s4 1966171168
        %v611 = vunpack.c.0.s8 %v610
        %v612 = vlaneseq
        %v613 = vshrl.u32 %v612, 7
        %v614 = vsub.s32 %v611, %v613
        %v615 = vrot.slane %v588, %v614
        %v617 = vunpack.c.l.s4 1966171168
        %v618 = vunpack.c.0.s8 %v617
        %v619 = vlaneseq
        %v620 = vshrl.u32 %v619, 7
        %v621 = vsub.s32 %v618, %v620
        %v622 = vrot.slane %v589, %v621
        %v623 = vcombine.low %v615, %v622
        %s626 = scalar_lea.vmem %s298, 1 [#allocation12]
        %627 = vst [vmem:[%s626] ss:$2 sm:$0xff] %v608
        %s628 = scalar_lea.vmem %s298, 17 [#allocation12]
        %629 = vst [vmem:[%s628] ss:$2 sm:$0xff] %v623
        %s630 = sand.u32 %s143, 1
        %s631 = scalar_lea.sflag [#allocation4], %s630
        %s632 = sand.u32 %s143, 1
        %s633 = smul.addr %s632, 32
        %s634 = scalar_lea.vmem [#allocation12], %s633
        // Predicated region
        $region61: #{tpu_custom_call.1} parent=39 // pred_check
          %p635 = pneg %p153
        $region62: #{tpu_custom_call.1} parent=39 // pred_check_branch
          %637 = sbr.rel (%p635) target = $region64
        $region63: #{tpu_custom_call.1} parent=39 // pred_region
          %s638 = smul.u32 16, %s25
          %s639 = ssub.s32 24, %s638
          %p640 = scmp.lt.s32.totalorder %s639, 16
          %s641 = scalar_select %p640, %s639, 16
          %s642 = smul.u32 32, %s641
          %s644 = ssub.s32 512, %s642
          %645 = vsyncadd %s631, %s644
          %p646 = scmp.ne.s32.totalorder 0, %s642
          %s647 = smul.addr %s638, 32
          %s648 = scalar_lea.hbm %s5, %s647
          %s649 = smul.u32 %s641, 2
          %s650 = sshll.u32 %s649, 4
          %s651 = sshll.u32 %s634, 4
          %s652 = int_to_ptr.vmem [resolvable:$true] %s651
          %654 = dma.vmem_to_hbm [thread:$0]  (%p646), %s652, %s650, %s648, %s631
        $region64: #{tpu_custom_call.1} parent=39 // pred_fallthru
          _
      $region40: #{tpu_custom_call.1} parent=5 // pred_fallthru
        _
      %p655 = scmp.le.s32.totalorder 2, %s20
      // Predicated region
      $region65: #{tpu_custom_call.1} parent=5 // pred_check
        %p656 = pneg %p655
      $region66: #{tpu_custom_call.1} parent=5 // pred_check_branch
        %658 = sbr.rel (%p656) target = $region68
      $region67: #{tpu_custom_call.1} parent=5 // pred_region
        %s659 = ssub.s32 %s20, 2
        // Predicated region
        $region69: #{tpu_custom_call.1} parent=67 // pred_check
          %p660 = pneg %p159
        $region70: #{tpu_custom_call.1} parent=67 // pred_check_branch
          %662 = sbr.rel (%p660) target = $region72
        $region71: #{tpu_custom_call.1} parent=67 // pred_region
          %s663 = sand.u32 %s144, 1
          %s664 = scalar_lea.sflag [#allocation4], %s663
          %s665 = sand.u32 %s144, 1
          %s666 = smul.addr %s665, 32
          %s667 = scalar_lea.vmem [#allocation12], %s666
          %668 = dma.done %s664, 512
        $region72: #{tpu_custom_call.1} parent=67 // pred_fallthru
          _
      $region68: #{tpu_custom_call.1} parent=5 // pred_fallthru
        _
    $region6: #{tpu_custom_call.1} parent=1 // loop_footer
      %s24 = sadd.s32 1, %s20
    $region7: #{tpu_custom_call.1} parent=1 // loop_footer_branch
      %19 = sbr.rel target = $region3
    $region8: #{tpu_custom_call.1} parent=1 // loop_exit
      _
    %669 = vsyncpa [#allocation3], 1
    %s670 = scalar_lea.sflag [#allocation3], 1
    %671 = vsyncpa %s670, 1
    %672 = vsyncpa [#allocation4], 1
    %s673 = scalar_lea.sflag [#allocation4], 1
    %674 = vsyncpa %s673, 1
    %675 = vsyncpa [#allocation5], 1
    %s676 = scalar_lea.sflag [#allocation5], 1
    %677 = vsyncpa %s676, 1
    %678 = vsyncpa [#allocation8], 1
    %679 = vsyncpa [#allocation11], 1

</llo_original>
